<compile_context>
chip_gen: v6e
topology: v6e:2x2x1
jax: 0.10.0
libtpu: 0.0.40
codegen_flags: <defaults>
</compile_context>

<pallas_src>
import functools
import math

import jax
import jax.numpy as jnp
from jax.experimental import pallas as pl
from jax.experimental.pallas import tpu as pltpu


# ---------------------------------------------------------------------------
# pltpu.roll sign-convention probe (run once, eagerly, tiny kernel).
# ---------------------------------------------------------------------------
@functools.lru_cache(maxsize=None)
def _roll_follows_numpy() -> bool:
    """Probe whether pltpu.roll matches np.roll's sign convention.

    The fused kernel needs shifted[:, q] == x[:, (q + off) % M]; under the
    np.roll convention that is shift = (-off) % M, otherwise shift = off % M.
    """
    def _k(x_ref, o_ref):
        o_ref[...] = pltpu.roll(x_ref[...], 1, axis=1)

    x = jnp.arange(8 * 128, dtype=jnp.float32).reshape(8, 128)
    y = pl.pallas_call(
        _k, out_shape=jax.ShapeDtypeStruct((8, 128), jnp.float32))(x)
    return bool(y[0, 1] == x[0, 0])


# ---------------------------------------------------------------------------
# Fused kernel: in-kernel im2col (9 rolled+masked taps) -> bf16 MXU matmul
# -> BatchNorm (f32 scale/shift) -> ReLU -> per-(sample,channel) max|.|
# -> multiply by the predicted binary mask.  Channels on sublanes, flattened
# (sample, spatial) on the 128-lane axis -> all big stores are lane-dense.
# ---------------------------------------------------------------------------
def _fused_kernel(x_ref, w_ref, s_ref, b_ref, m_ref, out_ref, acts_ref,
                  *, TB, H, W, roll_numpy):
    HW = H * W
    M = TB * HW

    x = x_ref[...]                                       # (Cin, M) f32

    # per-sample (row, col) coordinates of every lane position
    q = jax.lax.broadcasted_iota(jnp.int32, (1, M), 1)
    row = (q % HW) // W
    col = q % W

    # im2col via shifted feature maps: tap (dh, dw) at flat position q is
    # x[:, q + dh*W + dw] when (row+dh, col+dw) is inside the HxW image,
    # else 0 (== the conv's zero padding).  Lane rolls wrap, but every
    # wrapped / cross-sample position is exactly a masked one.
    taps = []
    for dh in (-1, 0, 1):
        for dw in (-1, 0, 1):
            off = dh * W + dw
            if off == 0:
                shifted = x
            else:
                amt = (-off) % M if roll_numpy else off % M
                shifted = pltpu.roll(x, amt, axis=1)
            valid = ((row + dh >= 0) & (row + dh < H) &
                     (col + dw >= 0) & (col + dw < W))
            taps.append(jnp.where(valid, shifted, 0.0))

    # (9*Cin, M): each tap is a full (8, M) sublane tile -> aligned concat.
    patches = jnp.concatenate(taps, axis=0).astype(jnp.bfloat16)

    # conv as a single lane-dense MXU matmul: (Cout, K) @ (K, M) -> (Cout, M)
    acc = jnp.dot(w_ref[...], patches, preferred_element_type=jnp.float32)

    # BatchNorm (eval, folded to scale/shift) + ReLU, all in f32.
    y = jnp.maximum(acc * s_ref[...] + b_ref[...], 0.0)  # (Cout, M)

    m = m_ref[...]                                        # (Cout, TB) binary
    for tb in range(TB):                                  # static unroll (TB=4)
        seg = y[:, tb * HW:(tb + 1) * HW]                 # (Cout, HW)
        # get_fmap_criteria on the UNMASKED activation
        acts_ref[:, tb:tb + 1] = jnp.max(jnp.abs(seg), axis=1, keepdims=True)
        # out = out * mask_binary (broadcast over spatial)
        out_ref[:, tb * HW:(tb + 1) * HW] = seg * m[:, tb:tb + 1]


def fused_conv_bn_relu_mask(x_cm, w2_bf16, bn_scale, bn_shift, mask_cb,
                            *, TB, H, W):
    """x_cm: (Cin, M) f32, w2_bf16: (Cout, 9*Cin) bf16, bn_*: (Cout,1) f32,
    mask_cb: (Cout, TB) f32.  Returns (out (Cout, M) f32, acts (Cout, TB) f32).
    """
    Cin, M = x_cm.shape
    Cout, K = w2_bf16.shape
    assert M == TB * H * W and K == 9 * Cin

    kern = functools.partial(_fused_kernel, TB=TB, H=H, W=W,
                             roll_numpy=_roll_follows_numpy())

    # Single grid step: the whole problem (M = 1024, ~0.5 MB of VMEM) fits
    # comfortably, so per-step pipeline overhead is paid exactly once.
    # TODO(synk): on v7x (2 TCs) or at larger H/W/B, split M into multiples of
    # H*W with dimension_semantics=("parallel",) and re-derive the tile vs the
    # 64 MiB VMEM budget.
    return pl.pallas_call(
        kern,
        out_shape=(jax.ShapeDtypeStruct((Cout, M), jnp.float32),
                   jax.ShapeDtypeStruct((Cout, TB), jnp.float32)),
        grid_spec=pltpu.PrefetchScalarGridSpec(
            num_scalar_prefetch=0,
            grid=(1,),
            in_specs=[
                pl.BlockSpec((Cin, M), lambda i: (0, 0)),
                pl.BlockSpec((Cout, K), lambda i: (0, 0)),
                pl.BlockSpec((Cout, 1), lambda i: (0, 0)),
                pl.BlockSpec((Cout, 1), lambda i: (0, 0)),
                pl.BlockSpec((Cout, TB), lambda i: (0, 0)),
            ],
            out_specs=(
                pl.BlockSpec((Cout, M), lambda i: (0, 0)),
                pl.BlockSpec((Cout, TB), lambda i: (0, 0)),
            ),
        ),
        compiler_params=pltpu.CompilerParams(
            dimension_semantics=("arbitrary",)),
    )(x_cm, w2_bf16, bn_scale, bn_shift, mask_cb)


# ---------------------------------------------------------------------------
# ConvWithMask.forward
# ---------------------------------------------------------------------------
def conv_with_mask_forward(x5, params, prev, all_mask_logits, all_gt_mask,
                           residual=None):
    """Returns the torch module's 7-tuple plus the masked activation
    (out * mask_binary) appended, so the fused kernel's output is not dead
    code (perf-review correctness concern; the torch module discards it)."""
    # TODO(synk): residual branch (out += residual before fn) not wired into
    # the fused kernel; only residual=None is supported here.
    assert residual is None
    T, B, Cin, H, W = x5.shape
    Cout = params["conv_w"].shape[0]
    TB, HW = T * B, H * W
    M = TB * HW
    kk = 9      # conv.kernel_size[0] ** 2
    g = 1       # conv.groups
    bias_ops = 0

    # ---- layout: channels on sublanes, (sample, spatial) flattened on lanes -
    x_cm = x5.reshape(TB, Cin, HW).transpose(1, 0, 2).reshape(Cin, M)

    # weight columns ordered (kh, kw, cin) to match the in-kernel tap order
    w2 = (params["conv_w"].transpose(0, 2, 3, 1)
          .reshape(Cout, 9 * Cin).astype(jnp.bfloat16))
    bn_s = (params["bn_gamma"] / jnp.sqrt(params["bn_var"] + 1e-5))
    bn_b = params["bn_beta"] - params["bn_mean"] * bn_s

    # ---- mask predictor (mode='joint', Cin != 3 except-branch): plain jnp ---
    # A 4x8 @ 8x8 matmul behind its own pallas_call is pure launch overhead.
    dim = params["pred_dim"]
    xi = x5[:, :, ::4, ::4, ::4]                   # F.interpolate nearest 0.25
    Ci, Hi, Wi = xi.shape[2], xi.shape[3], xi.shape[4]
    pooled = xi.reshape(TB, Ci, dim, Hi // dim, dim, Wi // dim).mean(axis=(3, 5))
    feat = pooled.reshape(TB, Ci * dim * dim)      # AdaptiveNormalize(norm=False)
    wm = params["mask_w"].reshape(Cout, Ci * dim * dim).T
    logits = feat @ wm + params["mask_b"][None, :]            # (TB, Cout)
    binary = (logits > 0).astype(jnp.float32)      # == sigmoid(logit) > 0.5

    # ---- fused conv3x3 + BN + ReLU + maxabs-over-spatial + mask-apply -------
    out_cm, acts_cb = fused_conv_bn_relu_mask(
        x_cm, w2,
        bn_s.reshape(Cout, 1).astype(jnp.float32),
        bn_b.reshape(Cout, 1).astype(jnp.float32),
        binary.T, TB=TB, H=H, W=W)

    out_masked5 = (out_cm.reshape(Cout, TB, H, W).transpose(1, 0, 2, 3)
                   .reshape(T, B, Cout, H, W))
    acts = acts_cb.T                                           # (TB, Cout)

    mask_logit = logits.reshape(T, B, Cout, 1, 1)
    mask_binary = binary.reshape(T, B, Cout, 1, 1)

    # ---- gt_mask (gt_type='mass'): get_gt_mask_ratio(out_unmasked, ratio) ---
    ratio = params["ratio"]
    delta = 1e-5
    if ratio < 0:
        gt_mask = jnp.ones((TB, Cout, 1, 1), jnp.float32)
    else:
        total = jnp.sum(acts, axis=1, keepdims=True)
        # safe denominator (reference NaNs if a sample's ReLU output is all 0)
        norm = acts / jnp.where(total > 0, total, 1.0)
        if ratio == 1:
            zero_unsorted = (norm <= delta).astype(jnp.float32)
        else:
            order = jnp.argsort(-norm, axis=1)                # descending
            sorted_acts = jnp.take_along_axis(norm, order, axis=1)
            cums = jnp.cumsum(sorted_acts, axis=1)
            zero_sorted = ((cums - ratio) > delta).astype(jnp.float32)
            zero_unsorted = jnp.zeros((TB, Cout), jnp.float32).at[
                jnp.arange(TB)[:, None], order].set(zero_sorted)
        gt_mask = (1.0 - zero_unsorted).reshape(TB, Cout, 1, 1)

    # ---- bookkeeping / FLOPs (plain JAX glue) --------------------------------
    all_mask_logits = all_mask_logits + [mask_logit]
    all_gt_mask = all_gt_mask + [gt_mask]
    active_cur = jnp.mean(mask_binary, axis=(2, 3)).sum(axis=1)      # (T, 1)
    # torch: unique(out_old.nonzero()[:, 1]) over dim 1 (=B); ReLU output >= 0,
    # so "any nonzero" == "per-channel max > 0", available from acts.
    nz_per_b = jnp.any(acts.reshape(T, B, Cout) > 0, axis=(0, 2))    # (B,)
    total_gt_cur = jnp.sum(nz_per_b.astype(jnp.float32))
    output_sz = out_masked5.shape[2] * out_masked5.shape[3]          # Cout * H
    bs = x5.shape[0]
    FLOPs = bs * active_cur * output_sz * (prev // g * kk + bias_ops)
    total_ch = total_gt_cur * jnp.ones([out_masked5.shape[0]], jnp.float32)
    actual_FLOPs = bs * total_ch * output_sz * (prev // g * kk + bias_ops)

    return (x5, mask_binary, all_mask_logits, active_cur, all_gt_mask,
            FLOPs, actual_FLOPs, out_masked5)


# ---------------------------------------------------------------------------
if __name__ == "__main__":
    T, B, Cin, Cout, H, W = 2, 2, 8, 8, 16, 16
    target, ratio = 32, 0.7
    dim = round(math.sqrt(target / Cin))                 # = 2
    pred_in = Cin // 4                                   # Cin != 3 branch
    h_feat = dim * dim * pred_in                         # = 8

    key = jax.random.PRNGKey(0)
    ks = jax.random.split(key, 8)
    params = {
        "conv_w": jax.random.normal(ks[0], (Cout, Cin, 3, 3), jnp.float32)
                  * (1.0 / math.sqrt(Cin * 9)),
        "bn_gamma": jax.random.uniform(ks[1], (Cout,), jnp.float32, 0.5, 1.5),
        "bn_beta": jax.random.normal(ks[2], (Cout,), jnp.float32) * 0.1,
        "bn_mean": jax.random.normal(ks[3], (Cout,), jnp.float32) * 0.1,
        "bn_var": jax.random.uniform(ks[4], (Cout,), jnp.float32, 0.5, 1.5),
        "mask_w": jax.random.normal(ks[5], (Cout, h_feat, 1, 1), jnp.float32)
                  * (1.0 / math.sqrt(h_feat)),
        "mask_b": jax.random.normal(ks[6], (Cout,), jnp.float32) * 0.1,
        "pred_dim": dim,
        "ratio": ratio,
    }
    x = jax.random.normal(ks[7], (T, B, Cin, H, W), jnp.float32)

    result = conv_with_mask_forward(x, params, prev=Cin,
                                    all_mask_logits=[], all_gt_mask=[])
    jax.block_until_ready(result)
    (_, mask_binary, _, _, _, _, _, out_masked5) = result

    # ---- correctness self-check vs a pure-XLA reference ----------------------
    # Operands are quantized to bf16 exactly like the kernel does, so only
    # accumulation order differs -> tight tolerance catches structural bugs.
    xq = x.astype(jnp.bfloat16).astype(jnp.float32)
    wq = params["conv_w"].astype(jnp.bfloat16).astype(jnp.float32)
    conv_ref = jax.lax.conv_general_dilated(
        xq.reshape(T * B, Cin, H, W), wq, window_strides=(1, 1),
        padding=((1, 1), (1, 1)),
        dimension_numbers=("NCHW", "OIHW", "NCHW"))
    s_ref = params["bn_gamma"] / jnp.sqrt(params["bn_var"] + 1e-5)
    t_ref = params["bn_beta"] - params["bn_mean"] * s_ref
    y_ref = jnp.maximum(conv_ref * s_ref[None, :, None, None]
                        + t_ref[None, :, None, None], 0.0)
    ref_masked = y_ref * mask_binary.reshape(T * B, Cout, 1, 1)
    err = float(jnp.max(jnp.abs(out_masked5.reshape(T * B, Cout, H, W)
                                - ref_masked)))
    if (not math.isfinite(err)) or err > 1e-2:
        raise AssertionError(f"fused kernel mismatch vs reference: {err}")

    print("KERNEL_OK")
</pallas_src>

<mosaic_0001>
module attributes {stable_mosaic.version = 11 : i64} {
  func.func @_k(%arg0: memref<8x128xf32, #tpu.memory_space<vmem>>, %arg1: memref<8x128xf32, #tpu.memory_space<vmem>>) attributes {dimension_semantics = [], scalar_prefetch = 0 : i64, scratch_operands = 0 : i64, tpu.core_type = #tpu.core_type<tc>} {
    %c0 = arith.constant 0 : index
    %c0_0 = arith.constant 0 : index
    %0 = vector.load %arg0[%c0, %c0_0] : memref<8x128xf32, #tpu.memory_space<vmem>>, vector<8x128xf32>
    %c1_i32 = arith.constant 1 : i32
    %1 = tpu.dynamic_rotate %0 by %c1_i32 dim 1 : vector<8x128xf32>, i32 -> vector<8x128xf32>
    %c0_1 = arith.constant 0 : index
    %c0_2 = arith.constant 0 : index
    %2 = vector.load %arg1[%c0_1, %c0_2] : memref<8x128xf32, #tpu.memory_space<vmem>>, vector<8x128xf32>
    tpu.vector_store %arg1[%c0_1, %c0_2], %1 {strides = array<i32>} : memref<8x128xf32, #tpu.memory_space<vmem>>, vector<8x128xf32>,
    return
  }
}

</mosaic_0001>

<llo_original>
// kernel: tpu_custom_call.1
$region0: #{tpu_custom_call.1}
  #allocation0 [shape = 'u32[]', space=smem, size = 0x4, offset = 0x4, fixed_abs, tag = 'smem constant byte address 0x4 - core index']
  #allocation1 [shape = 'u32[144,128]{1,0:T(1,128)}', space=vmem, size = 0x12000, scoped, tag = 'internal scratch']
  %s0 = inlined_call_operand.hbm [shape: f32[8,128], index: 0, kind: input, shape index: {}]
  %s1 = inlined_call_operand.hbm [shape: f32[8,128], index: 1, kind: output, shape index: {}]
  %s2 = sld [smem:[#allocation0]]
  $region18: #{tpu_custom_call.1} parent=0
    _
  %s4 = ssub.s32 1, %s2
  %s5 = scalar_select 0, %s4, %s2
  $region1: #{tpu_custom_call.1} parent=0
    #allocation2 [shape = 'u8[4096]{0}', space=vmem, size = 0x1000, scoped, tag = 'input window, operand 0, single buffered']
    #allocation3 [shape = 's32[1]{0}', space=sflag, size = 0x4, scoped, tag = 'scoped memory for tpu_custom_call.1']
    #allocation4 [shape = 's32[1]{0}', space=sflag, size = 0x4, scoped, tag = 'scoped memory for tpu_custom_call.1']
    #allocation5 [shape = 'u8[4096]{0}', space=vmem, size = 0x1000, scoped, tag = 'output window, operand 0, single buffered']
    %6 = vsyncpa [#allocation3], 0
    %7 = vsyncpa [#allocation4], 0
    // Predicated region
    $region2: #{tpu_custom_call.1} parent=1 // pred_check
      _
    $region3: #{tpu_custom_call.1} parent=1 // pred_check_branch
      %9 = sbr.rel (0) target = $region5
    $region4: #{tpu_custom_call.1} parent=1 // pred_region
      %s11 = ssub.s32 128, 128
      %12 = vsyncadd [#allocation3], %s11
      %s14 = sshll.u32 [#allocation2], 4
      %s15 = int_to_ptr.vmem [resolvable:$true] %s14
      %17 = dma.hbm_to_vmem [thread:$0]  %s0, 128, %s15, [#allocation3]
    $region5: #{tpu_custom_call.1} parent=1 // pred_fallthru
      _
    // Predicated region
    $region6: #{tpu_custom_call.1} parent=1 // pred_check
      _
    $region7: #{tpu_custom_call.1} parent=1 // pred_check_branch
      %19 = sbr.rel (0) target = $region9
    $region8: #{tpu_custom_call.1} parent=1 // pred_region
      %20 = dma.done [#allocation3], 128
    $region9: #{tpu_custom_call.1} parent=1 // pred_fallthru
      _
    %v21 = vld [vmem:[#allocation2] sm:$0xff]
    %22 = vrot.lane.b32.xlu0 %v21, 1
    %v23 = vpop.permute.xlu0 %22
    %24 = vst [vmem:[#allocation5] sm:$0xff] %v23
    // Predicated region
    $region10: #{tpu_custom_call.1} parent=1 // pred_check
      _
    $region11: #{tpu_custom_call.1} parent=1 // pred_check_branch
      %26 = sbr.rel (0) target = $region13
    $region12: #{tpu_custom_call.1} parent=1 // pred_region
      %s28 = ssub.s32 128, 128
      %29 = vsyncadd [#allocation4], %s28
      %s31 = sshll.u32 [#allocation5], 4
      %s32 = int_to_ptr.vmem [resolvable:$true] %s31
      %34 = dma.vmem_to_hbm [thread:$0]  %s32, 128, %s1, [#allocation4]
    $region13: #{tpu_custom_call.1} parent=1 // pred_fallthru
      _
    // Predicated region
    $region14: #{tpu_custom_call.1} parent=1 // pred_check
      _
    $region15: #{tpu_custom_call.1} parent=1 // pred_check_branch
      %36 = sbr.rel (0) target = $region17
    $region16: #{tpu_custom_call.1} parent=1 // pred_region
      %37 = dma.done [#allocation4], 128
    $region17: #{tpu_custom_call.1} parent=1 // pred_fallthru
      _
    %38 = vsyncpa [#allocation3], 1
    %39 = vsyncpa [#allocation4], 1

</llo_original>
